<compile_context>
chip_gen: v7x
topology: tpu7x:2x2x1
jax: 0.10.0
libtpu: 0.0.40
codegen_flags: <defaults>
</compile_context>

<pallas_src>
import functools
import math

import jax
import jax.numpy as jnp
from jax.experimental import pallas as pl
from jax.experimental.pallas import tpu as pltpu


_NEG_BIG = -1e30  # mask value for class-padding columns


def _round_up(x, m):
    return (x + m - 1) // m * m


def _choose_tiles(b, c, f, itemsize):
    # Row tile: cap at 256 (MXU-friendly M), keep a multiple of 8 for small B.
    tile_b = 256 if b >= 256 else _round_up(b, 8)
    # Class tile: ~4 MiB per em buffer (x2 double-buffering by the pipeline),
    # capped at 2048 so it also fits v7x's halved (64 MiB physical) VMEM.
    tile_c = (4 * 1024 * 1024) // max(f * itemsize, 1)
    tile_c = max(128, (tile_c // 128) * 128)
    tile_c = min(tile_c, 2048)
    tile_c = min(tile_c, _round_up(c, 128))
    return tile_b, tile_c


def _vmem_limit_bytes(tile_b, tile_c, f, itemsize):
    dbl = 2 * (tile_b * f * itemsize        # x tile (double-buffered)
               + tile_c * f * itemsize      # em tile (dominant stream)
               + tile_b * 4                 # targets tile
               + tile_b * 128 * 4)          # stats output tile
    work = 6 * tile_b * tile_c * 4          # (TB, TC) f32 intermediates / spill slack
    scratch = 5 * tile_b * 128 * 4          # padded accumulator scratch estimate
    total = dbl + work + scratch + (4 << 20)
    return int(min(max(total, 8 << 20), 48 << 20))


def _npc_kernel(x_ref, em_ref, tgt_ref, out_ref,
                m_sc, l_sc, ks_sc, sraw_sc, tlog_sc,
                *, inv_tau, thr, delta, tile_c, num_classes,
                class_padded, compute_adaptive):
    ci = pl.program_id(1)
    nc = pl.num_programs(1)

    @pl.when(ci == 0)
    def _init():
        m_sc[...] = jnp.full_like(m_sc, -jnp.inf)
        l_sc[...] = jnp.zeros_like(l_sc)
        tlog_sc[...] = jnp.zeros_like(tlog_sc)
        if compute_adaptive:
            ks_sc[...] = jnp.zeros_like(ks_sc)
            sraw_sc[...] = jnp.zeros_like(sraw_sc)

    # (TILE_B, TILE_C) logits tile on the MXU: bf16 inputs, f32 accumulation,
    # scaled by a precomputed 1/tau (no VALU divide).
    logits = jax.lax.dot_general(
        x_ref[...], em_ref[...], (((1,), (1,)), ((), ())),
        preferred_element_type=jnp.float32) * inv_tau

    tb, tc = logits.shape
    col = jax.lax.broadcasted_iota(jnp.int32, (tb, tc), 1) + ci * tile_c
    if class_padded:  # only emitted when C was padded up to a tile multiple
        logits = jnp.where(col < num_classes, logits, _NEG_BIG)

    # Online softmax running statistics (f32).
    m_prev = m_sc[...]
    m_new = jnp.maximum(m_prev, jnp.max(logits, axis=1, keepdims=True))
    alpha = jnp.exp(m_prev - m_new)
    l_sc[...] = alpha * l_sc[...] + jnp.sum(jnp.exp(logits - m_new),
                                            axis=1, keepdims=True)
    m_sc[...] = m_new

    # Target logit: exactly one class tile contains each row's target column.
    is_tgt = col == tgt_ref[...]
    tlog_sc[...] += jnp.sum(jnp.where(is_tgt, logits, 0.0), axis=1, keepdims=True)

    if compute_adaptive:
        onehot = (logits > thr).astype(jnp.float32)
        ks_sc[...] += jnp.sum(onehot, axis=1, keepdims=True)
        sraw_sc[...] += jnp.sum(onehot * logits, axis=1, keepdims=True)

    @pl.when(ci == nc - 1)
    def _finalize():
        lse = m_sc[...] + jnp.log(l_sc[...])       # (TB, 1) logsumexp
        logp_t = tlog_sc[...] - lse                # log_softmax at the target
        loss_ce = -logp_t                          # per-row cross-entropy
        if compute_adaptive:
            ks1 = ks_sc[...]
            ks_mask = (ks1 > 1.0).astype(jnp.float32)
            kk = ks1 * ks_mask + (1.0 - ks_mask) * 2.0
            w = delta * pl.reciprocal(kk * jnp.log(kk), approx=True) * ks_mask
            s_logp = sraw_sc[...] - ks1 * lse      # sum_j onehot_j * logp_j
            onehot_t = (tlog_sc[...] > thr).astype(jnp.float32)
            # scatter-overwrite semantics: target column weight is exactly 1
            loss_ada = loss_ce - w * (s_logp - onehot_t * logp_t)
        else:
            ks1 = jnp.zeros_like(loss_ce)
            loss_ada = jnp.zeros_like(loss_ce)
        # Lane-dense packed stats slab: lane0=loss_ada, lane1=loss_ce, lane2=ks1.
        lane = jax.lax.broadcasted_iota(jnp.int32, out_ref.shape, 1)
        out_ref[...] = (jnp.where(lane == 0, loss_ada, 0.0)
                        + jnp.where(lane == 1, loss_ce, 0.0)
                        + jnp.where(lane == 2, ks1, 0.0))


def _npc_pallas(x, em, targets, *, tau, lambda0, delta, compute_adaptive,
                matmul_dtype=jnp.bfloat16, tile_b=None, tile_c=None):
    b, f = x.shape
    c, f2 = em.shape
    assert f == f2, (x.shape, em.shape)

    itemsize = jnp.dtype(matmul_dtype).itemsize
    auto_tb, auto_tc = _choose_tiles(b, c, f, itemsize)
    tile_b = auto_tb if tile_b is None else tile_b
    tile_c = auto_tc if tile_c is None else tile_c

    b_pad = _round_up(b, tile_b)
    c_pad = _round_up(c, tile_c)

    x_p = jnp.pad(x.astype(matmul_dtype), ((0, b_pad - b), (0, 0)))
    em_p = jnp.pad(em.astype(matmul_dtype), ((0, c_pad - c), (0, 0)))
    tgt_p = jnp.pad(targets.astype(jnp.int32), (0, b_pad - b)).reshape(b_pad, 1)

    kernel = functools.partial(
        _npc_kernel,
        inv_tau=float(1.0 / tau),
        thr=float(lambda0 / tau),
        delta=float(delta),
        tile_c=tile_c,
        num_classes=c,
        class_padded=(c_pad != c),
        compute_adaptive=bool(compute_adaptive),
    )

    grid_spec = pltpu.PrefetchScalarGridSpec(
        num_scalar_prefetch=0,
        grid=(b_pad // tile_b, c_pad // tile_c),
        in_specs=[
            pl.BlockSpec((tile_b, f), lambda bi, ci: (bi, 0)),   # x rows
            pl.BlockSpec((tile_c, f), lambda bi, ci: (ci, 0)),   # em class stream
            pl.BlockSpec((tile_b, 1), lambda bi, ci: (bi, 0)),   # targets
        ],
        out_specs=pl.BlockSpec((tile_b, 128), lambda bi, ci: (bi, 0)),
        scratch_shapes=[pltpu.VMEM((tile_b, 1), jnp.float32)] * 5,
    )

    return pl.pallas_call(
        kernel,
        grid_spec=grid_spec,
        out_shape=jax.ShapeDtypeStruct((b_pad, 128), jnp.float32),
        compiler_params=pltpu.CompilerParams(
            dimension_semantics=("parallel", "arbitrary"),
            vmem_limit_bytes=_vmem_limit_bytes(tile_b, tile_c, f, itemsize),
        ),
    )(x_p, em_p, tgt_p)


def nonparametric_classifier_forward(inputs, targets, em, epoch,
                                     tau=0.05, lambda0=1.0, delta=1.0, mu=0.4,
                                     matmul_dtype=jnp.bfloat16,
                                     tile_b=None, tile_c=None):
    """Mirrors nonparametric_classifier.forward. Returns (loss, ks).

    `epoch` must be a Python int (the PyTorch module also branches on it at
    Python level); the unused loss branch is specialised away at trace time.
    """
    # mu feeds only ExemplarMemory.backward (memory update) -> no forward effect.
    # TODO(synk): exemplar-memory in-place update happens in backward(), not forward.
    _mu_eff = min(mu / 60.0 * (epoch + 1), 1.0)  # noqa: F841 (kept for fidelity)

    compute_adaptive = epoch > 4
    b = inputs.shape[0]
    stats = _npc_pallas(inputs, em, targets, tau=tau, lambda0=lambda0, delta=delta,
                        compute_adaptive=compute_adaptive,
                        matmul_dtype=matmul_dtype, tile_b=tile_b, tile_c=tile_c)
    if compute_adaptive:
        loss = jnp.mean(stats[:b, 0])            # adaptive-selection weighted NLL
        ks = stats[:b, 2]                        # ks1: per-row threshold counts
    else:
        loss = jnp.mean(stats[:b, 1])            # F.cross_entropy, reduction='mean'
        ks = jnp.zeros((128,), jnp.float32)      # torch.FloatTensor(128).zero_()
    return loss, ks


def _reference_forward(x, targets, em, epoch, tau, lambda0, delta, matmul_dtype):
    """Pure-JAX reference (same bf16-cast inputs, f32 math)."""
    xq = x.astype(matmul_dtype).astype(jnp.float32)
    emq = em.astype(matmul_dtype).astype(jnp.float32)
    logits = (xq @ emq.T) / tau
    logp = jax.nn.log_softmax(logits, axis=1)
    b, c = logits.shape
    oh_tgt = jax.nn.one_hot(targets, c, dtype=jnp.float32)
    if epoch > 4:
        thr = lambda0 / tau
        onehot = (logits > thr).astype(jnp.float32)
        ks1 = onehot.sum(axis=1)
        ks_mask = (ks1 > 1).astype(jnp.float32)
        kk = ks1 * ks_mask + (1 - ks_mask) * 2
        w = ((delta / (kk * jnp.log(kk))) * ks_mask)[:, None]
        tline = jnp.where(oh_tgt == 1, 1.0, onehot * w)
        loss = jnp.mean(-(tline * logp).sum(axis=1))
        ks = ks1
    else:
        loss = jnp.mean(-(oh_tgt * logp).sum(axis=1))
        ks = jnp.zeros((128,), jnp.float32)
    return loss, ks


if __name__ == "__main__":
    key = jax.random.PRNGKey(0)
    B, F, C, P = 16, 128, 384, 8          # batch, features, classes, prototypes
    k1, k2, k3, k4 = jax.random.split(key, 4)

    # Clustered exemplar memory so the adaptive threshold is genuinely exercised
    # (each row has ~C/P classes well above the threshold, rest well below).
    noise = 0.1 / math.sqrt(F)
    protos = jax.random.normal(k1, (P, F), jnp.float32)
    protos = protos / jnp.linalg.norm(protos, axis=1, keepdims=True)
    cls_proto = jnp.arange(C) % P
    em = protos[cls_proto] + noise * jax.random.normal(k2, (C, F), jnp.float32)
    em = em / jnp.linalg.norm(em, axis=1, keepdims=True)

    targets = jax.random.randint(k3, (B,), 0, C, jnp.int32)
    x = protos[cls_proto[targets]] + noise * jax.random.normal(k4, (B, F), jnp.float32)
    x = x / jnp.linalg.norm(x, axis=1, keepdims=True)

    tau, lambda0, delta = 0.05, 0.75, 1.0   # threshold = 15: far from all logits

    # epoch > 4 (adaptive branch); small class tile forces the multi-tile
    # streaming / online-softmax path through the kernel.
    loss_a, ks_a = nonparametric_classifier_forward(
        x, targets, em, epoch=10, tau=tau, lambda0=lambda0, delta=delta, tile_c=128)
    # epoch <= 4 (cross-entropy branch), default tiling.
    loss_c, ks_c = nonparametric_classifier_forward(
        x, targets, em, epoch=2, tau=tau, lambda0=lambda0, delta=delta)
    jax.block_until_ready((loss_a, ks_a, loss_c, ks_c))

    ref_a, ref_ks_a = _reference_forward(x, targets, em, 10, tau, lambda0, delta,
                                         jnp.bfloat16)
    ref_c, _ = _reference_forward(x, targets, em, 2, tau, lambda0, delta,
                                  jnp.bfloat16)
    assert jnp.allclose(loss_a, ref_a, rtol=2e-2, atol=2e-2), (loss_a, ref_a)
    assert jnp.allclose(loss_c, ref_c, rtol=2e-2, atol=2e-2), (loss_c, ref_c)
    assert jnp.allclose(ks_a, ref_ks_a, atol=0.5), (ks_a, ref_ks_a)

    print("KERNEL_OK")
</pallas_src>

<mosaic_0001>
module attributes {stable_mosaic.version = 11 : i64} {
  func.func @_npc_kernel(%arg0: i32, %arg1: i32, %arg2: memref<16x128xbf16, #tpu.memory_space<vmem>>, %arg3: memref<128x128xbf16, #tpu.memory_space<vmem>>, %arg4: memref<16x1xi32, #tpu.memory_space<vmem>>, %arg5: memref<16x128xf32, #tpu.memory_space<vmem>>, %arg6: memref<16x1xf32, #tpu.memory_space<vmem>>, %arg7: memref<16x1xf32, #tpu.memory_space<vmem>>, %arg8: memref<16x1xf32, #tpu.memory_space<vmem>>, %arg9: memref<16x1xf32, #tpu.memory_space<vmem>>, %arg10: memref<16x1xf32, #tpu.memory_space<vmem>>) attributes {dimension_semantics = [#tpu.dimension_semantics<parallel>, #tpu.dimension_semantics<arbitrary>], iteration_bounds = array<i64: 1, 3>, scalar_prefetch = 0 : i64, scratch_operands = 5 : i64, tpu.core_type = #tpu.core_type<tc>, window_params = [{transform_indices = @transform_0, window_bounds = array<i64: 16, 128>}, {transform_indices = @transform_1, window_bounds = array<i64: 128, 128>}, {transform_indices = @transform_2, window_bounds = array<i64: 16, 1>}, {transform_indices = @transform_3, window_bounds = array<i64: 16, 128>}]} {
    %c0_i32 = arith.constant 0 : i32
    %0 = arith.cmpi eq, %arg1, %c0_i32 : i32
    %1 = arith.extui %0 : i1 to i32
    %c0_i32_0 = arith.constant 0 : i32
    %2 = arith.cmpi ne, %1, %c0_i32_0 : i32
    scf.if %2 {
      %cst_35 = arith.constant 0xFF800000 : f32
      %56 = vector.broadcast %cst_35 : f32 to vector<16x1xf32>
      %c0_36 = arith.constant 0 : index
      %c0_37 = arith.constant 0 : index
      %57 = vector.load %arg6[%c0_36, %c0_37] : memref<16x1xf32, #tpu.memory_space<vmem>>, vector<16x1xf32>
      tpu.vector_store %arg6[%c0_36, %c0_37], %56 {strides = array<i32>} : memref<16x1xf32, #tpu.memory_space<vmem>>, vector<16x1xf32>,
      %cst_38 = arith.constant 0.000000e+00 : f32
      %58 = vector.broadcast %cst_38 : f32 to vector<16x1xf32>
      %c0_39 = arith.constant 0 : index
      %c0_40 = arith.constant 0 : index
      %59 = vector.load %arg7[%c0_39, %c0_40] : memref<16x1xf32, #tpu.memory_space<vmem>>, vector<16x1xf32>
      tpu.vector_store %arg7[%c0_39, %c0_40], %58 {strides = array<i32>} : memref<16x1xf32, #tpu.memory_space<vmem>>, vector<16x1xf32>,
      %cst_41 = arith.constant 0.000000e+00 : f32
      %60 = vector.broadcast %cst_41 : f32 to vector<16x1xf32>
      %c0_42 = arith.constant 0 : index
      %c0_43 = arith.constant 0 : index
      %61 = vector.load %arg10[%c0_42, %c0_43] : memref<16x1xf32, #tpu.memory_space<vmem>>, vector<16x1xf32>
      tpu.vector_store %arg10[%c0_42, %c0_43], %60 {strides = array<i32>} : memref<16x1xf32, #tpu.memory_space<vmem>>, vector<16x1xf32>,
      %cst_44 = arith.constant 0.000000e+00 : f32
      %62 = vector.broadcast %cst_44 : f32 to vector<16x1xf32>
      %c0_45 = arith.constant 0 : index
      %c0_46 = arith.constant 0 : index
      %63 = vector.load %arg8[%c0_45, %c0_46] : memref<16x1xf32, #tpu.memory_space<vmem>>, vector<16x1xf32>
      tpu.vector_store %arg8[%c0_45, %c0_46], %62 {strides = array<i32>} : memref<16x1xf32, #tpu.memory_space<vmem>>, vector<16x1xf32>,
      %cst_47 = arith.constant 0.000000e+00 : f32
      %64 = vector.broadcast %cst_47 : f32 to vector<16x1xf32>
      %c0_48 = arith.constant 0 : index
      %c0_49 = arith.constant 0 : index
      %65 = vector.load %arg9[%c0_48, %c0_49] : memref<16x1xf32, #tpu.memory_space<vmem>>, vector<16x1xf32>
      tpu.vector_store %arg9[%c0_48, %c0_49], %64 {strides = array<i32>} : memref<16x1xf32, #tpu.memory_space<vmem>>, vector<16x1xf32>,
    } else {
    }
    %c0 = arith.constant 0 : index
    %c0_1 = arith.constant 0 : index
    %3 = vector.load %arg2[%c0, %c0_1] : memref<16x128xbf16, #tpu.memory_space<vmem>>, vector<16x128xbf16>
    %c0_2 = arith.constant 0 : index
    %c0_3 = arith.constant 0 : index
    %4 = vector.load %arg3[%c0_2, %c0_3] : memref<128x128xbf16, #tpu.memory_space<vmem>>, vector<128x128xbf16>
    %cst = arith.constant dense<0.000000e+00> : vector<16x128xf32>
    %5 = tpu.matmul %3, %4, %cst {dimension_numbers = #tpu.dot_dimension_numbers<[1], [1], [0], [0], [0, 0, 1, 0], [], []>} : vector<16x128xbf16>, vector<128x128xbf16>, vector<16x128xf32> -> vector<16x128xf32>
    %cst_4 = arith.constant 2.000000e+01 : f32
    %6 = vector.broadcast %cst_4 : f32 to vector<16x128xf32>
    %7 = arith.mulf %5, %6 : vector<16x128xf32>
    %8 = tpu.iota {dimensions = array<i32: 1>} : vector<16x128xi32>
    %c128_i32 = arith.constant 128 : i32
    %9 = arith.muli %arg1, %c128_i32 : i32
    %10 = vector.broadcast %9 : i32 to vector<16x128xi32>
    %11 = arith.addi %8, %10 : vector<16x128xi32>
    %c0_5 = arith.constant 0 : index
    %c0_6 = arith.constant 0 : index
    %12 = vector.load %arg6[%c0_5, %c0_6] : memref<16x1xf32, #tpu.memory_space<vmem>>, vector<16x1xf32>
    %cst_7 = arith.constant dense<0xFF800000> : vector<16xf32>
    %13 = vector.multi_reduction <maximumf>, %7, %cst_7 [1] : vector<16x128xf32> to vector<16xf32>
    %14 = vector.shape_cast %13 : vector<16xf32> to vector<16x1xf32>
    %15 = arith.maximumf %12, %14 : vector<16x1xf32>
    %16 = arith.subf %12, %15 : vector<16x1xf32>
    %17 = math.exp %16 : vector<16x1xf32>
    %c0_8 = arith.constant 0 : index
    %c0_9 = arith.constant 0 : index
    %18 = vector.load %arg7[%c0_8, %c0_9] : memref<16x1xf32, #tpu.memory_space<vmem>>, vector<16x1xf32>
    %19 = arith.mulf %17, %18 : vector<16x1xf32>
    %20 = vector.broadcast %15 : vector<16x1xf32> to vector<16x128xf32>
    %21 = arith.subf %7, %20 : vector<16x128xf32>
    %22 = math.exp %21 : vector<16x128xf32>
    %cst_10 = arith.constant dense<0.000000e+00> : vector<16xf32>
    %23 = vector.multi_reduction <add>, %22, %cst_10 [1] : vector<16x128xf32> to vector<16xf32>
    %24 = vector.shape_cast %23 : vector<16xf32> to vector<16x1xf32>
    %25 = arith.addf %19, %24 : vector<16x1xf32>
    %c0_11 = arith.constant 0 : index
    %c0_12 = arith.constant 0 : index
    %26 = vector.load %arg7[%c0_11, %c0_12] : memref<16x1xf32, #tpu.memory_space<vmem>>, vector<16x1xf32>
    tpu.vector_store %arg7[%c0_11, %c0_12], %25 {strides = array<i32>} : memref<16x1xf32, #tpu.memory_space<vmem>>, vector<16x1xf32>,
    %c0_13 = arith.constant 0 : index
    %c0_14 = arith.constant 0 : index
    %27 = vector.load %arg6[%c0_13, %c0_14] : memref<16x1xf32, #tpu.memory_space<vmem>>, vector<16x1xf32>
    tpu.vector_store %arg6[%c0_13, %c0_14], %15 {strides = array<i32>} : memref<16x1xf32, #tpu.memory_space<vmem>>, vector<16x1xf32>,
    %c0_15 = arith.constant 0 : index
    %c0_16 = arith.constant 0 : index
    %28 = vector.load %arg4[%c0_15, %c0_16] : memref<16x1xi32, #tpu.memory_space<vmem>>, vector<16x1xi32>
    %29 = vector.broadcast %28 : vector<16x1xi32> to vector<16x128xi32>
    %30 = arith.cmpi eq, %11, %29 : vector<16x128xi32>
    %c0_17 = arith.constant 0 : index
    %c0_18 = arith.constant 0 : index
    %31 = vector.load %arg10[%c0_17, %c0_18] : memref<16x1xf32, #tpu.memory_space<vmem>>, vector<16x1xf32>
    %cst_19 = arith.constant 0.000000e+00 : f32
    %32 = vector.broadcast %cst_19 : f32 to vector<16x128xf32>
    %33 = arith.select %30, %7, %32 : vector<16x128xi1>, vector<16x128xf32>
    %cst_20 = arith.constant dense<0.000000e+00> : vector<16xf32>
    %34 = vector.multi_reduction <add>, %33, %cst_20 [1] : vector<16x128xf32> to vector<16xf32>
    %35 = vector.shape_cast %34 : vector<16xf32> to vector<16x1xf32>
    %36 = arith.addf %31, %35 : vector<16x1xf32>
    %c0_21 = arith.constant 0 : index
    %c0_22 = arith.constant 0 : index
    %37 = vector.load %arg10[%c0_21, %c0_22] : memref<16x1xf32, #tpu.memory_space<vmem>>, vector<16x1xf32>
    tpu.vector_store %arg10[%c0_21, %c0_22], %36 {strides = array<i32>} : memref<16x1xf32, #tpu.memory_space<vmem>>, vector<16x1xf32>,
    %cst_23 = arith.constant 1.500000e+01 : f32
    %38 = vector.broadcast %cst_23 : f32 to vector<16x128xf32>
    %39 = arith.cmpf ogt, %7, %38 : vector<16x128xf32>
    %40 = arith.extui %39 : vector<16x128xi1> to vector<16x128xi32>
    %41 = arith.sitofp %40 : vector<16x128xi32> to vector<16x128xf32>
    %c0_24 = arith.constant 0 : index
    %c0_25 = arith.constant 0 : index
    %42 = vector.load %arg8[%c0_24, %c0_25] : memref<16x1xf32, #tpu.memory_space<vmem>>, vector<16x1xf32>
    %cst_26 = arith.constant dense<0.000000e+00> : vector<16xf32>
    %43 = vector.multi_reduction <add>, %41, %cst_26 [1] : vector<16x128xf32> to vector<16xf32>
    %44 = vector.shape_cast %43 : vector<16xf32> to vector<16x1xf32>
    %45 = arith.addf %42, %44 : vector<16x1xf32>
    %c0_27 = arith.constant 0 : index
    %c0_28 = arith.constant 0 : index
    %46 = vector.load %arg8[%c0_27, %c0_28] : memref<16x1xf32, #tpu.memory_space<vmem>>, vector<16x1xf32>
    tpu.vector_store %arg8[%c0_27, %c0_28], %45 {strides = array<i32>} : memref<16x1xf32, #tpu.memory_space<vmem>>, vector<16x1xf32>,
    %c0_29 = arith.constant 0 : index
    %c0_30 = arith.constant 0 : index
    %47 = vector.load %arg9[%c0_29, %c0_30] : memref<16x1xf32, #tpu.memory_space<vmem>>, vector<16x1xf32>
    %48 = arith.mulf %41, %7 : vector<16x128xf32>
    %cst_31 = arith.constant dense<0.000000e+00> : vector<16xf32>
    %49 = vector.multi_reduction <add>, %48, %cst_31 [1] : vector<16x128xf32> to vector<16xf32>
    %50 = vector.shape_cast %49 : vector<16xf32> to vector<16x1xf32>
    %51 = arith.addf %47, %50 : vector<16x1xf32>
    %c0_32 = arith.constant 0 : index
    %c0_33 = arith.constant 0 : index
    %52 = vector.load %arg9[%c0_32, %c0_33] : memref<16x1xf32, #tpu.memory_space<vmem>>, vector<16x1xf32>
    tpu.vector_store %arg9[%c0_32, %c0_33], %51 {strides = array<i32>} : memref<16x1xf32, #tpu.memory_space<vmem>>, vector<16x1xf32>,
    %c2_i32 = arith.constant 2 : i32
    %53 = arith.cmpi eq, %arg1, %c2_i32 : i32
    %54 = arith.extui %53 : i1 to i32
    %c0_i32_34 = arith.constant 0 : i32
    %55 = arith.cmpi ne, %54, %c0_i32_34 : i32
    scf.if %55 {
      %c0_35 = arith.constant 0 : index
      %c0_36 = arith.constant 0 : index
      %56 = vector.load %arg6[%c0_35, %c0_36] : memref<16x1xf32, #tpu.memory_space<vmem>>, vector<16x1xf32>
      %c0_37 = arith.constant 0 : index
      %c0_38 = arith.constant 0 : index
      %57 = vector.load %arg7[%c0_37, %c0_38] : memref<16x1xf32, #tpu.memory_space<vmem>>, vector<16x1xf32>
      %58 = math.log %57 : vector<16x1xf32>
      %59 = arith.addf %56, %58 : vector<16x1xf32>
      %c0_39 = arith.constant 0 : index
      %c0_40 = arith.constant 0 : index
      %60 = vector.load %arg10[%c0_39, %c0_40] : memref<16x1xf32, #tpu.memory_space<vmem>>, vector<16x1xf32>
      %61 = arith.subf %60, %59 : vector<16x1xf32>
      %cst_41 = arith.constant 0.000000e+00 : f32
      %62 = vector.broadcast %cst_41 : f32 to vector<16x1xf32>
      %63 = arith.subf %62, %61 : vector<16x1xf32>
      %c0_42 = arith.constant 0 : index
      %c0_43 = arith.constant 0 : index
      %64 = vector.load %arg8[%c0_42, %c0_43] : memref<16x1xf32, #tpu.memory_space<vmem>>, vector<16x1xf32>
      %cst_44 = arith.constant 1.000000e+00 : f32
      %65 = vector.broadcast %cst_44 : f32 to vector<16x1xf32>
      %66 = arith.cmpf ogt, %64, %65 : vector<16x1xf32>
      %67 = arith.extui %66 : vector<16x1xi1> to vector<16x1xi32>
      %68 = arith.sitofp %67 : vector<16x1xi32> to vector<16x1xf32>
      %69 = arith.mulf %64, %68 : vector<16x1xf32>
      %cst_45 = arith.constant 1.000000e+00 : f32
      %70 = vector.broadcast %cst_45 : f32 to vector<16x1xf32>
      %71 = arith.subf %70, %68 : vector<16x1xf32>
      %cst_46 = arith.constant 2.000000e+00 : f32
      %72 = vector.broadcast %cst_46 : f32 to vector<16x1xf32>
      %73 = arith.mulf %71, %72 : vector<16x1xf32>
      %74 = arith.addf %69, %73 : vector<16x1xf32>
      %75 = math.log %74 : vector<16x1xf32>
      %76 = arith.mulf %74, %75 : vector<16x1xf32>
      %77 = tpu.reciprocal %76 {approx = true} : vector<16x1xf32> -> vector<16x1xf32>
      %cst_47 = arith.constant 1.000000e+00 : f32
      %78 = vector.broadcast %cst_47 : f32 to vector<16x1xf32>
      %79 = arith.mulf %78, %77 : vector<16x1xf32>
      %80 = arith.mulf %79, %68 : vector<16x1xf32>
      %c0_48 = arith.constant 0 : index
      %c0_49 = arith.constant 0 : index
      %81 = vector.load %arg9[%c0_48, %c0_49] : memref<16x1xf32, #tpu.memory_space<vmem>>, vector<16x1xf32>
      %82 = arith.mulf %64, %59 : vector<16x1xf32>
      %83 = arith.subf %81, %82 : vector<16x1xf32>
      %c0_50 = arith.constant 0 : index
      %c0_51 = arith.constant 0 : index
      %84 = vector.load %arg10[%c0_50, %c0_51] : memref<16x1xf32, #tpu.memory_space<vmem>>, vector<16x1xf32>
      %cst_52 = arith.constant 1.500000e+01 : f32
      %85 = vector.broadcast %cst_52 : f32 to vector<16x1xf32>
      %86 = arith.cmpf ogt, %84, %85 : vector<16x1xf32>
      %87 = arith.extui %86 : vector<16x1xi1> to vector<16x1xi32>
      %88 = arith.sitofp %87 : vector<16x1xi32> to vector<16x1xf32>
      %89 = arith.mulf %88, %61 : vector<16x1xf32>
      %90 = arith.subf %83, %89 : vector<16x1xf32>
      %91 = arith.mulf %80, %90 : vector<16x1xf32>
      %92 = arith.subf %63, %91 : vector<16x1xf32>
      %93 = tpu.iota {dimensions = array<i32: 1>} : vector<16x128xi32>
      %c0_i32_53 = arith.constant 0 : i32
      %94 = vector.broadcast %c0_i32_53 : i32 to vector<16x128xi32>
      %95 = arith.cmpi eq, %93, %94 : vector<16x128xi32>
      %cst_54 = arith.constant 0.000000e+00 : f32
      %96 = vector.shape_cast %92 : vector<16x1xf32> to vector<16x1xf32>
      %97 = vector.broadcast %96 : vector<16x1xf32> to vector<16x128xf32>
      %98 = vector.broadcast %cst_54 : f32 to vector<16x128xf32>
      %99 = arith.select %95, %97, %98 : vector<16x128xi1>, vector<16x128xf32>
      %c1_i32 = arith.constant 1 : i32
      %100 = vector.broadcast %c1_i32 : i32 to vector<16x128xi32>
      %101 = arith.cmpi eq, %93, %100 : vector<16x128xi32>
      %cst_55 = arith.constant 0.000000e+00 : f32
      %102 = vector.shape_cast %63 : vector<16x1xf32> to vector<16x1xf32>
      %103 = vector.broadcast %102 : vector<16x1xf32> to vector<16x128xf32>
      %104 = vector.broadcast %cst_55 : f32 to vector<16x128xf32>
      %105 = arith.select %101, %103, %104 : vector<16x128xi1>, vector<16x128xf32>
      %106 = arith.addf %99, %105 : vector<16x128xf32>
      %c2_i32_56 = arith.constant 2 : i32
      %107 = vector.broadcast %c2_i32_56 : i32 to vector<16x128xi32>
      %108 = arith.cmpi eq, %93, %107 : vector<16x128xi32>
      %cst_57 = arith.constant 0.000000e+00 : f32
      %109 = vector.shape_cast %64 : vector<16x1xf32> to vector<16x1xf32>
      %110 = vector.broadcast %109 : vector<16x1xf32> to vector<16x128xf32>
      %111 = vector.broadcast %cst_57 : f32 to vector<16x128xf32>
      %112 = arith.select %108, %110, %111 : vector<16x128xi1>, vector<16x128xf32>
      %113 = arith.addf %106, %112 : vector<16x128xf32>
      %c0_58 = arith.constant 0 : index
      %c0_59 = arith.constant 0 : index
      %114 = vector.load %arg5[%c0_58, %c0_59] : memref<16x128xf32, #tpu.memory_space<vmem>>, vector<16x128xf32>
      tpu.vector_store %arg5[%c0_58, %c0_59], %113 {strides = array<i32>} : memref<16x128xf32, #tpu.memory_space<vmem>>, vector<16x128xf32>,
    } else {
    }
    return
  }
  func.func @transform_0(%arg0: i32, %arg1: i32) -> (i32, i32) {
    %c0_i32 = arith.constant 0 : i32
    %c0_i32_0 = arith.constant 0 : i32
    return %arg0, %c0_i32 : i32, i32
  }
  func.func @transform_1(%arg0: i32, %arg1: i32) -> (i32, i32) {
    %c0_i32 = arith.constant 0 : i32
    %c0_i32_0 = arith.constant 0 : i32
    return %arg1, %c0_i32 : i32, i32
  }
  func.func @transform_2(%arg0: i32, %arg1: i32) -> (i32, i32) {
    %c0_i32 = arith.constant 0 : i32
    %c0_i32_0 = arith.constant 0 : i32
    return %arg0, %c0_i32 : i32, i32
  }
  func.func @transform_3(%arg0: i32, %arg1: i32) -> (i32, i32) {
    %c0_i32 = arith.constant 0 : i32
    %c0_i32_0 = arith.constant 0 : i32
    return %arg0, %c0_i32 : i32, i32
  }
}

</mosaic_0001>

<llo_original>
// kernel: tpu_custom_call.1
$region0: #{tpu_custom_call.1}
  #allocation0 [shape = 'u32[]', space=smem, size = 0x4, offset = 0x4, fixed_abs, tag = 'smem constant byte address 0x4 - core index']
  #allocation1 [shape = 'u32[144,128]{1,0:T(1,128)}', space=vmem, size = 0x12000, scoped, tag = 'internal scratch']
  #allocation2 [shape = 'f32[16,1]{1,0:T(8,128)}', space=vmem, size = 0x2000, scoped, tag = 'scratch operand']
  #allocation3 [shape = 'f32[16,1]{1,0:T(8,128)}', space=vmem, size = 0x2000, scoped, tag = 'scratch operand']
  #allocation4 [shape = 'f32[16,1]{1,0:T(8,128)}', space=vmem, size = 0x2000, scoped, tag = 'scratch operand']
  #allocation5 [shape = 'f32[16,1]{1,0:T(8,128)}', space=vmem, size = 0x2000, scoped, tag = 'scratch operand']
  #allocation6 [shape = 'f32[16,1]{1,0:T(8,128)}', space=vmem, size = 0x2000, scoped, tag = 'scratch operand']
  %s0 = inlined_call_operand.vmem [shape: bf16[16,128], index: 0, kind: input, shape index: {}]
  %s1 = inlined_call_operand.hbm [shape: bf16[384,128], index: 1, kind: input, shape index: {}]
  %s2 = inlined_call_operand.vmem [shape: s32[16,1], index: 2, kind: input, shape index: {}]
  %s3 = inlined_call_operand.hbm [shape: f32[16,128], index: 3, kind: output, shape index: {}]
  %s4 = sld [smem:[#allocation0]]
  $region57: #{tpu_custom_call.1} parent=0
    _
  %s6 = ssub.s32 1, %s4
  %s7 = scalar_select 0, %s6, %s4
  $region1: #{tpu_custom_call.1} parent=0
    #allocation7 [shape = 'u8[65536]{0}', space=vmem, size = 0x10000, scoped, tag = 'input window, operand 1']
    #allocation8 [shape = 's32[2]{0}', space=sflag, size = 0x8, scoped, tag = 'scoped memory for tpu_custom_call.1']
    #allocation9 [shape = 's32[2]{0}', space=sflag, size = 0x8, scoped, tag = 'scoped memory for tpu_custom_call.1']
    #allocation10 [shape = 'u8[8192]{0}', space=vmem, size = 0x2000, scoped, tag = 'output window, operand 0, single buffered']
    %8 = vsyncpa [#allocation8], 0
    %s9 = scalar_lea.sflag [#allocation8], 1
    %10 = vsyncpa %s9, 0
    %11 = vsyncpa [#allocation9], 0
    loop: start=0, step=1, limit=5
    $region2: #{tpu_custom_call.1} parent=1 // loop_pre_header
      _
    $region3: #{tpu_custom_call.1} parent=1 // loop_header
      %s13 = sphi 0, %s17
      %p14 = scmp.ge.s32.totalorder %s13, 5
      %s20 = sphi 0, %s32
      %s21 = sphi 0, %s28
      %s22 = sphi 0, %s20
      %s23 = sphi 0, %s21
      %s24 = sphi 0, %s22
      %s25 = sphi 0, %s23
      %s35 = sphi 0, %s37
      %s38 = sphi 0, %s35
      %s39 = sphi 0, %s38
      %s55 = sphi 0, %s39
      %s61 = sphi 0, %s63
      %s64 = sphi 0, %s61
      %s65 = sphi 0, %s64
      %s81 = sphi 0, %s65
      %s87 = sphi 0, %s89
      %s90 = sphi 0, %s87
      %s91 = sphi 0, %s90
      %s107 = sphi 0, %s91
      %s113 = sphi 0, %s115
      %s116 = sphi 0, %s113
      %s117 = sphi 0, %s116
      %s133 = sphi 0, %s117
    $region4: #{tpu_custom_call.1} parent=1 // loop_header_branch
      %16 = sbr.rel (%p14) target = $region8
    $region5: #{tpu_custom_call.1} parent=1 // loop_body
      %s18 = ssub.s32 %s13, 1
      %s19 = ssub.s32 %s13, 2
      %s26 = sadd.s32 1, %s21
      %p27 = scmp.ge.s32.totalorder %s26, 3
      %s28 = scalar_select %p27, 0, %s26
      %s29 = sadd.s32 1, %s20
      %s30 = scalar_select %p27, %s29, %s20
      %p31 = scmp.ge.s32.totalorder %s30, 1
      %s32 = scalar_select %p31, 0, %s30
      %s33 = ssub.s32 %s20, %s32
      %p34 = scmp.eq.s32.totalorder %s33, 0
      %s36 = sadd.s32 %s35, 1
      %s37 = scalar_select %p34, %s35, %s36
      %p40 = pneg %p34
      %p41 = scmp.eq.s32.totalorder %s13, 2
      %p42 = por %p40, %p41
      %p43 = scmp.ne.s32.totalorder %s35, %s38
      %p44 = scmp.eq.s32.totalorder %s13, 0
      %p45 = por %p43, %p44
      %p46 = scmp.ne.s32.totalorder %s35, %s38
      %p47 = scmp.eq.s32.totalorder %s18, 2
      %p48 = por %p46, %p47
      %p49 = scmp.ne.s32.totalorder %s38, %s39
      %p50 = scmp.eq.s32.totalorder %s18, 0
      %p51 = por %p49, %p50
      %p52 = scmp.ne.s32.totalorder %s38, %s39
      %p53 = scmp.eq.s32.totalorder %s19, 2
      %p54 = por %p52, %p53
      %p56 = scmp.ne.s32.totalorder %s39, %s55
      %p57 = scmp.eq.s32.totalorder %s19, 0
      %p58 = por %p56, %p57
      %s59 = ssub.s32 %s21, %s28
      %p60 = scmp.eq.s32.totalorder %s59, 0
      %s62 = sadd.s32 %s61, 1
      %s63 = scalar_select %p60, %s61, %s62
      %p66 = pneg %p60
      %p67 = scmp.eq.s32.totalorder %s13, 2
      %p68 = por %p66, %p67
      %p69 = scmp.ne.s32.totalorder %s61, %s64
      %p70 = scmp.eq.s32.totalorder %s13, 0
      %p71 = por %p69, %p70
      %p72 = scmp.ne.s32.totalorder %s61, %s64
      %p73 = scmp.eq.s32.totalorder %s18, 2
      %p74 = por %p72, %p73
      %p75 = scmp.ne.s32.totalorder %s64, %s65
      %p76 = scmp.eq.s32.totalorder %s18, 0
      %p77 = por %p75, %p76
      %p78 = scmp.ne.s32.totalorder %s64, %s65
      %p79 = scmp.eq.s32.totalorder %s19, 2
      %p80 = por %p78, %p79
      %p82 = scmp.ne.s32.totalorder %s65, %s81
      %p83 = scmp.eq.s32.totalorder %s19, 0
      %p84 = por %p82, %p83
      %s85 = ssub.s32 %s20, %s32
      %p86 = scmp.eq.s32.totalorder %s85, 0
      %s88 = sadd.s32 %s87, 1
      %s89 = scalar_select %p86, %s87, %s88
      %p92 = pneg %p86
      %p93 = scmp.eq.s32.totalorder %s13, 2
      %p94 = por %p92, %p93
      %p95 = scmp.ne.s32.totalorder %s87, %s90
      %p96 = scmp.eq.s32.totalorder %s13, 0
      %p97 = por %p95, %p96
      %p98 = scmp.ne.s32.totalorder %s87, %s90
      %p99 = scmp.eq.s32.totalorder %s18, 2
      %p100 = por %p98, %p99
      %p101 = scmp.ne.s32.totalorder %s90, %s91
      %p102 = scmp.eq.s32.totalorder %s18, 0
      %p103 = por %p101, %p102
      %p104 = scmp.ne.s32.totalorder %s90, %s91
      %p105 = scmp.eq.s32.totalorder %s19, 2
      %p106 = por %p104, %p105
      %p108 = scmp.ne.s32.totalorder %s91, %s107
      %p109 = scmp.eq.s32.totalorder %s19, 0
      %p110 = por %p108, %p109
      %s111 = ssub.s32 %s20, %s32
      %p112 = scmp.eq.s32.totalorder %s111, 0
      %s114 = sadd.s32 %s113, 1
      %s115 = scalar_select %p112, %s113, %s114
      %p118 = pneg %p112
      %p119 = scmp.eq.s32.totalorder %s13, 2
      %p120 = por %p118, %p119
      %p121 = scmp.ne.s32.totalorder %s113, %s116
      %p122 = scmp.eq.s32.totalorder %s13, 0
      %p123 = por %p121, %p122
      %p124 = scmp.ne.s32.totalorder %s113, %s116
      %p125 = scmp.eq.s32.totalorder %s18, 2
      %p126 = por %p124, %p125
      %p127 = scmp.ne.s32.totalorder %s116, %s117
      %p128 = scmp.eq.s32.totalorder %s18, 0
      %p129 = por %p127, %p128
      %p130 = scmp.ne.s32.totalorder %s116, %s117
      %p131 = scmp.eq.s32.totalorder %s19, 2
      %p132 = por %p130, %p131
      %p134 = scmp.ne.s32.totalorder %s117, %s133
      %p135 = scmp.eq.s32.totalorder %s19, 0
      %p136 = por %p134, %p135
      %p137 = scmp.le.s32.totalorder 1, %s13
      %p138 = scmp.lt.s32.totalorder %s13, 4
      %p139 = pnand %p137, %p138
      %p140 = pneg %p139
      // Predicated region
      $region9: #{tpu_custom_call.1} parent=5 // pred_check
        _
      $region10: #{tpu_custom_call.1} parent=5 // pred_check_branch
        %142 = sbr.rel (%p139) target = $region12
      $region11: #{tpu_custom_call.1} parent=5 // pred_region
        %s143 = ssub.s32 %s13, 1
        // Predicated region
        $region13: #{tpu_custom_call.1} parent=11 // pred_check
          %p144 = pneg %p51
        $region14: #{tpu_custom_call.1} parent=11 // pred_check_branch
          %146 = sbr.rel (%p144) target = $region16
        $region15: #{tpu_custom_call.1} parent=11 // pred_region
          %s147 = smul.u32 2, %s22
          %p148 = scmp.lt.s32.totalorder %s147, 1
          %s149 = scalar_select %p148, %s147, 1
          %s150 = smul.addr %s149, 4
          %s151 = scalar_lea.vmem %s0, %s150
          %s152 = smul.u32 2, %s22
        $region16: #{tpu_custom_call.1} parent=11 // pred_fallthru
          _
        // Predicated region
        $region17: #{tpu_custom_call.1} parent=11 // pred_check
          %p153 = pneg %p103
        $region18: #{tpu_custom_call.1} parent=11 // pred_check_branch
          %155 = sbr.rel (%p153) target = $region20
        $region19: #{tpu_custom_call.1} parent=11 // pred_region
          %s156 = smul.u32 2, %s22
          %p157 = scmp.lt.s32.totalorder %s156, 1
          %s158 = scalar_select %p157, %s156, 1
          %s159 = smul.addr %s158, 8
          %s160 = scalar_lea.vmem %s2, %s159
          %s161 = smul.u32 2, %s22
        $region20: #{tpu_custom_call.1} parent=11 // pred_fallthru
          _
      $region12: #{tpu_custom_call.1} parent=5 // pred_fallthru
        _
      %p162 = scmp.lt.s32.totalorder %s13, 3
      // Predicated region
      $region21: #{tpu_custom_call.1} parent=5 // pred_check
        %p163 = pneg %p162
      $region22: #{tpu_custom_call.1} parent=5 // pred_check_branch
        %165 = sbr.rel (%p163) target = $region24
      $region23: #{tpu_custom_call.1} parent=5 // pred_region
        // Predicated region
        $region25: #{tpu_custom_call.1} parent=23 // pred_check
          %p166 = pneg %p71
        $region26: #{tpu_custom_call.1} parent=23 // pred_check_branch
          %168 = sbr.rel (%p166) target = $region28
        $region27: #{tpu_custom_call.1} parent=23 // pred_region
          %s169 = sand.u32 %s61, 1
          %s170 = scalar_lea.sflag [#allocation8], %s169
          %s171 = sand.u32 %s61, 1
          %s172 = smul.addr %s171, 64
          %s173 = scalar_lea.vmem [#allocation7], %s172
          %s174 = smul.u32 16, %s21
          %s176 = ssub.s32 1024, 1024
          %177 = vsyncadd %s170, %s176
          %s178 = smul.addr %s174, 64
          %s179 = scalar_lea.hbm %s1, %s178
          %s180 = sshll.u32 %s173, 4
          %s181 = int_to_ptr.vmem [resolvable:$true] %s180
          %186 = dma.hbm_to_vmem [thread:$0]  %s179, 1024, %s181, %s170, 64, 64, 4
        $region28: #{tpu_custom_call.1} parent=23 // pred_fallthru
          _
      $region24: #{tpu_custom_call.1} parent=5 // pred_fallthru
        _
      %p187 = scmp.le.s32.totalorder 1, %s13
      %p188 = scmp.lt.s32.totalorder %s13, 4
      %p189 = pnand %p187, %p188
      %p190 = pneg %p189
      // Predicated region
      $region29: #{tpu_custom_call.1} parent=5 // pred_check
        _
      $region30: #{tpu_custom_call.1} parent=5 // pred_check_branch
        %192 = sbr.rel (%p189) target = $region32
      $region31: #{tpu_custom_call.1} parent=5 // pred_region
        %s193 = ssub.s32 %s13, 1
        %s194 = sand.u32 %s64, 1
        %s195 = scalar_lea.sflag [#allocation8], %s194
        %s196 = sand.u32 %s64, 1
        %s197 = smul.addr %s196, 64
        %s198 = scalar_lea.vmem [#allocation7], %s197
        // Predicated region
        $region33: #{tpu_custom_call.1} parent=31 // pred_check
          %p199 = pneg %p77
        $region34: #{tpu_custom_call.1} parent=31 // pred_check_branch
          %201 = sbr.rel (%p199) target = $region36
        $region35: #{tpu_custom_call.1} parent=31 // pred_region
          %202 = dma.done %s195, 1024
        $region36: #{tpu_custom_call.1} parent=31 // pred_fallthru
          _
        %s203 = smul.u32 2, %s22
        %p204 = scmp.lt.s32.totalorder %s203, 1
        %s205 = scalar_select %p204, %s203, 1
        %s206 = smul.addr %s205, 4
        %s207 = scalar_lea.vmem %s0, %s206
        %p208 = pneg %p51
        %p209 = pneg %p48
        %s210 = sand.u32 %s64, 1
        %s211 = scalar_lea.sflag [#allocation8], %s210
        %s212 = sand.u32 %s64, 1
        %s213 = smul.addr %s212, 64
        %s214 = scalar_lea.vmem [#allocation7], %s213
        %p215 = pneg %p77
        %p216 = pneg %p74
        %s217 = smul.u32 2, %s22
        %p218 = scmp.lt.s32.totalorder %s217, 1
        %s219 = scalar_select %p218, %s217, 1
        %s220 = smul.addr %s219, 8
        %s221 = scalar_lea.vmem %s2, %s220
        %p222 = pneg %p103
        %p223 = pneg %p100
        %p224 = pneg %p129
        %p225 = pneg %p126
        %s226 = smul.u32 2, %s22
        %p227 = scmp.lt.s32.totalorder %s226, 1
        %s228 = scalar_select %p227, %s226, 1
        %s229 = smul.addr %s228, 4
        %s230 = scalar_lea.vmem %s0, %s229
        %s231 = smul.u32 2, %s22
        %s232 = smul.u32 16, %s23
        %s233 = smul.u32 2, %s22
        %p234 = scmp.lt.s32.totalorder %s233, 1
        %s235 = scalar_select %p234, %s233, 1
        %s236 = smul.addr %s235, 8
        %s237 = scalar_lea.vmem %s2, %s236
        %s238 = smul.u32 2, %s22
        %s239 = smul.u32 2, %s22
        %p241 = scmp.eq.s32.totalorder %s23, 0
        // Predicated region
        $region37: #{tpu_custom_call.1} parent=31 // pred_check
          %p242 = pneg %p241
        $region38: #{tpu_custom_call.1} parent=31 // pred_check_branch
          %244 = sbr.rel (%p242) target = $region40
        $region39: #{tpu_custom_call.1} parent=31 // pred_region
          %vm245 = vcmask 7168
          %246 = vst.msk [vmem:[#allocation2] sm:$0xff] %vm245, -inf
          %247 = vst.msk [vmem:[#allocation2 + $0x8] sm:$0xff] %vm245, -inf
          %248 = vst.msk [vmem:[#allocation3] sm:$0xff] %vm245, 0.0
          %249 = vst.msk [vmem:[#allocation3 + $0x8] sm:$0xff] %vm245, 0.0
          %250 = vst.msk [vmem:[#allocation6] sm:$0xff] %vm245, 0.0
          %251 = vst.msk [vmem:[#allocation6 + $0x8] sm:$0xff] %vm245, 0.0
          %252 = vst.msk [vmem:[#allocation4] sm:$0xff] %vm245, 0.0
          %253 = vst.msk [vmem:[#allocation4 + $0x8] sm:$0xff] %vm245, 0.0
          %254 = vst.msk [vmem:[#allocation5] sm:$0xff] %vm245, 0.0
          %255 = vst.msk [vmem:[#allocation5 + $0x8] sm:$0xff] %vm245, 0.0
        $region40: #{tpu_custom_call.1} parent=31 // pred_fallthru
          _
        %v256 = vld [vmem:[%s230] sm:$0xf]
        %v257 = vld [vmem:[%s230 + $0x4] sm:$0xf]
        %v258 = vld [vmem:[%s198] sm:$0xf]
        %v259 = vld [vmem:[%s198 + $0x4] sm:$0xf]
        %v260 = vld [vmem:[%s198 + $0x8] sm:$0xf]
        %v261 = vld [vmem:[%s198 + $0xc] sm:$0xf]
        %v262 = vld [vmem:[%s198 + $0x10] sm:$0xf]
        %v263 = vld [vmem:[%s198 + $0x14] sm:$0xf]
        %v264 = vld [vmem:[%s198 + $0x18] sm:$0xf]
        %v265 = vld [vmem:[%s198 + $0x1c] sm:$0xf]
        %v266 = vld [vmem:[%s198 + $0x20] sm:$0xf]
        %v267 = vld [vmem:[%s198 + $0x24] sm:$0xf]
        %v268 = vld [vmem:[%s198 + $0x28] sm:$0xf]
        %v269 = vld [vmem:[%s198 + $0x2c] sm:$0xf]
        %v270 = vld [vmem:[%s198 + $0x30] sm:$0xf]
        %v271 = vld [vmem:[%s198 + $0x34] sm:$0xf]
        %v272 = vld [vmem:[%s198 + $0x38] sm:$0xf]
        %v273 = vld [vmem:[%s198 + $0x3c] sm:$0xf]
        %v276 = vunpack.c.l.b16 %v256
        %v277 = vunpack.c.l.b16 %v257
        %v278 = vpack.c.b16 %v277, %v276
        %v296 = vunpack.c.l.b16 %v258
        %v297 = vunpack.c.l.b16 %v259
        %v298 = vunpack.c.l.b16 %v260
        %v299 = vunpack.c.l.b16 %v261
        %v300 = vunpack.c.l.b16 %v262
        %v301 = vunpack.c.l.b16 %v263
        %v302 = vunpack.c.l.b16 %v264
        %v303 = vunpack.c.l.b16 %v265
        %v304 = vunpack.c.l.b16 %v266
        %v305 = vunpack.c.l.b16 %v267
        %v306 = vunpack.c.l.b16 %v268
        %v307 = vunpack.c.l.b16 %v269
        %v308 = vunpack.c.l.b16 %v270
        %v309 = vunpack.c.l.b16 %v271
        %v310 = vunpack.c.l.b16 %v272
        %v311 = vunpack.c.l.b16 %v273
        %v312 = vpack.c.b16 %v297, %v296
        %v313 = vpack.c.b16 %v299, %v298
        %v314 = vpack.c.b16 %v301, %v300
        %v315 = vpack.c.b16 %v303, %v302
        %v316 = vpack.c.b16 %v305, %v304
        %v317 = vpack.c.b16 %v307, %v306
        %v318 = vpack.c.b16 %v309, %v308
        %v319 = vpack.c.b16 %v311, %v310
        %328 = vmatprep.subr.bf16.mxu0 0
        %329 = vmatpush1.bf16.xpose.msra.mxu0 %v312
        %330 = vmatprep.subr.bf16.mxu0 0
        %331 = vmatpush1.bf16.xpose.msra.mxu0 %v313
        %332 = vmatprep.subr.bf16.mxu0 0
        %333 = vmatpush1.bf16.xpose.msra.mxu0 %v314
        %334 = vmatprep.subr.bf16.mxu0 0
        %335 = vmatpush1.bf16.xpose.msra.mxu0 %v315
        %336 = vmatprep.subr.bf16.mxu0 0
        %337 = vmatpush1.bf16.xpose.msra.mxu0 %v316
        %338 = vmatprep.subr.bf16.mxu0 0
        %339 = vmatpush1.bf16.xpose.msra.mxu0 %v317
        %340 = vmatprep.subr.bf16.mxu0 0
        %341 = vmatpush1.bf16.xpose.msra.mxu0 %v318
        %342 = vmatprep.subr.bf16.mxu0 0
        %343 = vmatpush1.bf16.xpose.msra.mxu0 %v319
        %344 = vmatprep.subr.bf16.mxu0 0
        %345 = vmatpush1.bf16.xpose.msra.mxu0 0
        %346 = vmatprep.subr.bf16.mxu0 0
        %347 = vmatpush1.bf16.xpose.msra.mxu0 0
        %348 = vmatprep.subr.bf16.mxu0 0
        %349 = vmatpush1.bf16.xpose.msra.mxu0 0
        %350 = vmatprep.subr.bf16.mxu0 0
        %351 = vmatpush1.bf16.xpose.msra.mxu0 0
        %352 = vmatprep.subr.bf16.mxu0 0
        %353 = vmatpush1.bf16.xpose.msra.mxu0 0
        %354 = vmatprep.subr.bf16.mxu0 0
        %355 = vmatpush1.bf16.xpose.msra.mxu0 0
        %356 = vmatprep.subr.bf16.mxu0 0
        %357 = vmatpush1.bf16.xpose.msra.mxu0 0
        %358 = vmatprep.subr.bf16.mxu0 0
        %359 = vmatpush1.bf16.xpose.msra.mxu0 0
        %360 = vmatprep.mubr.bf16.mxu0 0
        %361 = vmatmul.mubr.bf16.gmra.mrb[0].mxu0 %v278
        %v362 = vpop.f32.mrb[0].mxu0
        %v363 = vadd.f32 0.0, %v362
        %v364 = vpop.f32.mrb[0].mxu0
        %v365 = vpop.f32.mrb[0].mxu0
        %v366 = vadd.f32 0.0, %v365
        %v367 = vpop.f32.mrb[0].mxu0
        %368 = vdwg.mxu0
        %v369 = vmul.f32 %v363, 20.0
        %v370 = vmul.f32 %v366, 20.0
        %v371 = vlaneseq
        %v372 = vand.u32 %v371, 127
        %s373 = smul.u32 %s23, 128
        %v374 = vstv %s373
        %v375 = vadd.s32 %v372, %v374
        %v376 = vld [vmem:[#allocation2] sm:$0xff]
        %v377 = vld [vmem:[#allocation2 + $0x8] sm:$0xff]
        %378 = vmax.xlane.f32.xlu0 %v369
        %v379 = vpop.xlane.xlu0 %378
        %380 = vmax.xlane.f32.xlu0 %v370
        %v381 = vpop.xlane.xlu0 %380
        %v382 = vmax.f32 %v376, %v379
        %v383 = vmax.f32 %v377, %v381
        %v384 = vsub.f32 %v376, %v382
        %v385 = vsub.f32 %v377, %v383
        %v386 = vmul.f32 %v384, 1.442695
        %v387 = vpow.pop %v386
        %v388 = vmul.f32 %v385, 1.442695
        %v389 = vpow.pop %v388
        %v390 = vld [vmem:[#allocation3] sm:$0xff]
        %v391 = vld [vmem:[#allocation3 + $0x8] sm:$0xff]
        %v392 = vmul.f32 %v387, %v390
        %v393 = vmul.f32 %v389, %v391
        %395 = vset.pattern.permute.xlu0 0
        %396 = vperm.xlu0 %395, %v382
        %v397 = vpop.permute.xlu0 %396
        %400 = vset.pattern.permute.xlu0 0
        %401 = vperm.xlu0 %400, %v383
        %v402 = vpop.permute.xlu0 %401
        %v404 = vsub.f32 %v369, %v397
        %v405 = vsub.f32 %v370, %v402
        %v406 = vmul.f32 %v404, 1.442695
        %v407 = vpow.pop %v406
        %v408 = vmul.f32 %v405, 1.442695
        %v409 = vpow.pop %v408
        %410 = vadd.xlane.f32.xlu0 %v407
        %v411 = vpop.xlane.xlu0 %410
        %412 = vadd.xlane.f32.xlu0 %v409
        %v413 = vpop.xlane.xlu0 %412
        %v414 = vadd.f32 %v392, %v411
        %v415 = vadd.f32 %v393, %v413
        %vm416 = vcmask 7168
        %417 = vst.msk [vmem:[#allocation3] sm:$0xff] %vm416, %v414
        %418 = vst.msk [vmem:[#allocation3 + $0x8] sm:$0xff] %vm416, %v415
        %419 = vst.msk [vmem:[#allocation2] sm:$0xff] %vm416, %v382
        %420 = vst.msk [vmem:[#allocation2 + $0x8] sm:$0xff] %vm416, %v383
        %v421 = vld [vmem:[%s237] sm:$0xff]
        %v422 = vld [vmem:[%s237 + $0x8] sm:$0xff]
        %423 = vset.pattern.permute.xlu0 0
        %424 = vperm.xlu0 %423, %v421
        %v425 = vpop.permute.xlu0 %424
        %426 = vset.pattern.permute.xlu0 0
        %427 = vperm.xlu0 %426, %v422
        %v428 = vpop.permute.xlu0 %427
        %vm429 = vcmp.eq.s32.totalorder %v375, %v425
        %vm430 = vcmp.eq.s32.totalorder %v375, %v428
        %v431 = vld [vmem:[#allocation6] sm:$0xff]
        %v432 = vld [vmem:[#allocation6 + $0x8] sm:$0xff]
        %v433 = vsel %vm429, %v369, 0.0
        %v434 = vsel %vm430, %v370, 0.0
        %435 = vadd.xlane.f32.xlu0 %v433
        %v436 = vpop.xlane.xlu0 %435
        %437 = vadd.xlane.f32.xlu0 %v434
        %v438 = vpop.xlane.xlu0 %437
        %v439 = vadd.f32 %v431, %v436
        %v440 = vadd.f32 %v432, %v438
        %441 = vst.msk [vmem:[#allocation6] sm:$0xff] %vm416, %v439
        %442 = vst.msk [vmem:[#allocation6 + $0x8] sm:$0xff] %vm416, %v440
        %vm443 = vcmp.gt.f32.partialorder %v369, 15.0
        %vm444 = vcmp.gt.f32.partialorder %v370, 15.0
        %v445 = vsel %vm443, 1, 0
        %v446 = vsel %vm444, 1, 0
        %v447 = vcvt.s32.f32 %v445
        %v448 = vcvt.s32.f32 %v446
        %v449 = vld [vmem:[#allocation4] sm:$0xff]
        %v450 = vld [vmem:[#allocation4 + $0x8] sm:$0xff]
        %451 = vadd.xlane.f32.xlu0 %v447
        %v452 = vpop.xlane.xlu0 %451
        %453 = vadd.xlane.f32.xlu0 %v448
        %v454 = vpop.xlane.xlu0 %453
        %v455 = vadd.f32 %v449, %v452
        %v456 = vadd.f32 %v450, %v454
        %457 = vst.msk [vmem:[#allocation4] sm:$0xff] %vm416, %v455
        %458 = vst.msk [vmem:[#allocation4 + $0x8] sm:$0xff] %vm416, %v456
        %v459 = vld [vmem:[#allocation5] sm:$0xff]
        %v460 = vld [vmem:[#allocation5 + $0x8] sm:$0xff]
        %v461 = vmul.f32 %v447, %v369
        %v462 = vmul.f32 %v448, %v370
        %463 = vadd.xlane.f32.xlu0 %v461
        %v464 = vpop.xlane.xlu0 %463
        %465 = vadd.xlane.f32.xlu0 %v462
        %v466 = vpop.xlane.xlu0 %465
        %v467 = vadd.f32 %v459, %v464
        %v468 = vadd.f32 %v460, %v466
        %469 = vst.msk [vmem:[#allocation5] sm:$0xff] %vm416, %v467
        %470 = vst.msk [vmem:[#allocation5 + $0x8] sm:$0xff] %vm416, %v468
        %p471 = scmp.eq.s32.totalorder %s23, 2
        // Predicated region
        $region41: #{tpu_custom_call.1} parent=31 // pred_check
          %p472 = pneg %p471
        $region42: #{tpu_custom_call.1} parent=31 // pred_check_branch
          %474 = sbr.rel (%p472) target = $region44
        $region43: #{tpu_custom_call.1} parent=31 // pred_region
          %v475 = vld [vmem:[#allocation2] sm:$0xff]
          %v476 = vld [vmem:[#allocation2 + $0x8] sm:$0xff]
          %v477 = vld [vmem:[#allocation3] sm:$0xff]
          %v478 = vld [vmem:[#allocation3 + $0x8] sm:$0xff]
          %v479 = vlog2.pop %v477
          %v480 = vmul.f32 %v479, 0.6931472
          %v481 = vlog2.pop %v478
          %v482 = vmul.f32 %v481, 0.6931472
          %v483 = vadd.f32 %v475, %v480
          %v484 = vadd.f32 %v476, %v482
          %v485 = vld [vmem:[#allocation6] sm:$0xff]
          %v486 = vld [vmem:[#allocation6 + $0x8] sm:$0xff]
          %v487 = vsub.f32 %v485, %v483
          %v488 = vsub.f32 %v486, %v484
          %v489 = vsub.f32 0.0, %v487
          %v490 = vsub.f32 0.0, %v488
          %v491 = vld [vmem:[#allocation4] sm:$0xff]
          %v492 = vld [vmem:[#allocation4 + $0x8] sm:$0xff]
          %vm493 = vcmp.gt.f32.partialorder %v491, 1.0
          %vm494 = vcmp.gt.f32.partialorder %v492, 1.0
          %v495 = vsel %vm493, 1, 0
          %v496 = vsel %vm494, 1, 0
          %v497 = vcvt.s32.f32 %v495
          %v498 = vcvt.s32.f32 %v496
          %v499 = vmul.f32 %v491, %v497
          %v500 = vmul.f32 %v492, %v498
          %v501 = vsub.f32 1.0, %v497
          %v502 = vsub.f32 1.0, %v498
          %v503 = vmul.f32 %v501, 2.0
          %v504 = vmul.f32 %v502, 2.0
          %v505 = vadd.f32 %v499, %v503
          %v506 = vadd.f32 %v500, %v504
          %v507 = vlog2.pop %v505
          %v508 = vmul.f32 %v507, 0.6931472
          %v509 = vlog2.pop %v506
          %v510 = vmul.f32 %v509, 0.6931472
          %v511 = vmul.f32 %v505, %v508
          %v512 = vmul.f32 %v506, %v510
          %v513 = vrcp.pop %v511
          %v514 = vrcp.pop %v512
          %v515 = vmul.f32 %v513, %v497
          %v516 = vmul.f32 %v514, %v498
          %v517 = vld [vmem:[#allocation5] sm:$0xff]
          %v518 = vld [vmem:[#allocation5 + $0x8] sm:$0xff]
          %v519 = vmul.f32 %v491, %v483
          %v520 = vmul.f32 %v492, %v484
          %v521 = vsub.f32 %v517, %v519
          %v522 = vsub.f32 %v518, %v520
          %vm523 = vcmp.gt.f32.partialorder %v485, 15.0
          %vm524 = vcmp.gt.f32.partialorder %v486, 15.0
          %v525 = vsel %vm523, 1, 0
          %v526 = vsel %vm524, 1, 0
          %v527 = vcvt.s32.f32 %v525
          %v528 = vcvt.s32.f32 %v526
          %v529 = vmul.f32 %v527, %v487
          %v530 = vmul.f32 %v528, %v488
          %v531 = vsub.f32 %v521, %v529
          %v532 = vsub.f32 %v522, %v530
          %v533 = vmul.f32 %v515, %v531
          %v534 = vmul.f32 %v516, %v532
          %v535 = vsub.f32 %v489, %v533
          %v536 = vsub.f32 %v490, %v534
          %vm537 = vcmp.eq.s32.totalorder %v372, 0
          %539 = vset.pattern.permute.xlu0 0
          %540 = vperm.xlu0 %539, %v535
          %v541 = vpop.permute.xlu0 %540
          %544 = vset.pattern.permute.xlu0 0
          %545 = vperm.xlu0 %544, %v536
          %v546 = vpop.permute.xlu0 %545
          %v548 = vsel %vm537, %v541, 0.0
          %v549 = vsel %vm537, %v546, 0.0
          %vm550 = vcmp.eq.s32.totalorder %v372, 1
          %552 = vset.pattern.permute.xlu0 0
          %553 = vperm.xlu0 %552, %v489
          %v554 = vpop.permute.xlu0 %553
          %557 = vset.pattern.permute.xlu0 0
          %558 = vperm.xlu0 %557, %v490
          %v559 = vpop.permute.xlu0 %558
          %v561 = vsel %vm550, %v554, 0.0
          %v562 = vsel %vm550, %v559, 0.0
          %v563 = vadd.f32 %v548, %v561
          %v564 = vadd.f32 %v549, %v562
          %vm565 = vcmp.eq.s32.totalorder %v372, 2
          %567 = vset.pattern.permute.xlu0 0
          %568 = vperm.xlu0 %567, %v491
          %v569 = vpop.permute.xlu0 %568
          %572 = vset.pattern.permute.xlu0 0
          %573 = vperm.xlu0 %572, %v492
          %v574 = vpop.permute.xlu0 %573
          %v576 = vsel %vm565, %v569, 0.0
          %v577 = vsel %vm565, %v574, 0.0
          %v578 = vadd.f32 %v563, %v576
          %v579 = vadd.f32 %v564, %v577
          %580 = vst [vmem:[#allocation10] sm:$0xff] %v578
          %581 = vst [vmem:[#allocation10 + $0x8] sm:$0xff] %v579
        $region44: #{tpu_custom_call.1} parent=31 // pred_fallthru
          _
        // Predicated region
        $region45: #{tpu_custom_call.1} parent=31 // pred_check
          %p582 = pneg %p126
        $region46: #{tpu_custom_call.1} parent=31 // pred_check_branch
          %584 = sbr.rel (%p582) target = $region48
        $region47: #{tpu_custom_call.1} parent=31 // pred_region
          %s585 = smul.u32 2, %s22
          %s587 = ssub.s32 256, 256
          %588 = vsyncadd [#allocation9], %s587
          %s589 = smul.addr %s585, 128
          %s590 = scalar_lea.hbm %s3, %s589
          %s591 = sshll.u32 [#allocation10], 4
          %s592 = int_to_ptr.vmem [resolvable:$true] %s591
          %597 = dma.vmem_to_hbm [thread:$0]  %s592, 256, %s590, [#allocation9], 128, 128, 8
        $region48: #{tpu_custom_call.1} parent=31 // pred_fallthru
          _
        // Predicated region
        $region49: #{tpu_custom_call.1} parent=31 // pred_check
          %p598 = pneg %p126
        $region50: #{tpu_custom_call.1} parent=31 // pred_check_branch
          %600 = sbr.rel (%p598) target = $region52
        $region51: #{tpu_custom_call.1} parent=31 // pred_region
          %601 = dma.done [#allocation9], 256
        $region52: #{tpu_custom_call.1} parent=31 // pred_fallthru
          _
      $region32: #{tpu_custom_call.1} parent=5 // pred_fallthru
        _
      %p602 = scmp.le.s32.totalorder 2, %s13
      // Predicated region
      $region53: #{tpu_custom_call.1} parent=5 // pred_check
        %p603 = pneg %p602
      $region54: #{tpu_custom_call.1} parent=5 // pred_check_branch
        %605 = sbr.rel (%p603) target = $region56
      $region55: #{tpu_custom_call.1} parent=5 // pred_region
        %s606 = ssub.s32 %s13, 2
      $region56: #{tpu_custom_call.1} parent=5 // pred_fallthru
        _
    $region6: #{tpu_custom_call.1} parent=1 // loop_footer
      %s17 = sadd.s32 1, %s13
    $region7: #{tpu_custom_call.1} parent=1 // loop_footer_branch
      %12 = sbr.rel target = $region3
    $region8: #{tpu_custom_call.1} parent=1 // loop_exit
      _
    %607 = vsyncpa [#allocation8], 1
    %s608 = scalar_lea.sflag [#allocation8], 1
    %609 = vsyncpa %s608, 1
    %610 = vsyncpa [#allocation9], 1
    %s611 = scalar_lea.sflag [#allocation9], 1
    %612 = vsyncpa %s611, 1

</llo_original>
